<compile_context>
chip_gen: v7x
topology: tpu7x:2x2x1
jax: 0.10.0
libtpu: 0.0.40
codegen_flags: <defaults>
</compile_context>

<pallas_src>
import functools
import math

import jax
import jax.numpy as jnp
import numpy as np
from jax.experimental import pallas as pl
from jax.experimental.pallas import tpu as pltpu


# ----------------------------- in-kernel helpers -----------------------------

def _div_const(x, c):
    """x // c for non-negative int32 x and positive Python-int constant c."""
    c = int(c)
    if c & (c - 1) == 0:
        return jnp.right_shift(x, c.bit_length() - 1)   # x >= 0, so arithmetic == logical
    return x // c  # TODO(synk): non-power-of-two path relies on Mosaic i32 vector division.


def _mod_const(x, c):
    """x % c for non-negative int32 x and positive Python-int constant c."""
    c = int(c)
    if c & (c - 1) == 0:
        return jnp.bitwise_and(x, c - 1)
    return x % c  # TODO(synk): non-power-of-two path relies on Mosaic i32 vector remainder.


def _sigmoid_softplus(x):
    """(sigmoid(x), softplus(x)) sharing a single exp(-|x|) EUP push.

    softplus is evaluated as max(x,0) + log(1 + exp(-|x|)); the log argument is
    in (1, 2] so it can never hit log(0) even for saturated logits.
    """
    e = jnp.exp(-jnp.abs(x))
    inv = 1.0 / (1.0 + e)
    sig = jnp.where(x >= 0.0, inv, e * inv)
    sp = jnp.maximum(x, 0.0) + jnp.log(1.0 + e)
    return sig, sp


def _stable_sigmoid(x):
    e = jnp.exp(-jnp.abs(x))
    inv = 1.0 / (1.0 + e)
    return jnp.where(x >= 0.0, inv, e * inv)


def _kl_bernoulli_elem(x, sig, sp, log_p, log_1mp):
    """Elementwise KL( Bernoulli(q=sigmoid(x)) || Bernoulli(p) ) in logit space.

    log q = x - softplus(x), log(1-q) = -softplus(x).
    TODO(synk): KL_bernoulli is not defined in the reference source; this is the
    standard forward KL, summed by the caller.
    """
    log_q = x - sp
    log_1mq = -sp
    return sig * (log_q - log_p) + (1.0 - sig) * (log_1mq - log_1mp)


# --------------------------------- kernels -----------------------------------

def _det_stream_kernel(rd, d_dim, n_valid, log_p, log_1mp,
                       # inputs
                       det_q_ref, splits_ref,
                       # outputs
                       det_sel_ref, det_prob_ref, split_prop_ref, kl_ref):
    """Streaming (TILE, 128) lane-dense block of the detector / split tensors."""
    x = det_q_ref[...]                                   # (TILE, 128) f32
    tile, lanes = x.shape

    # Regenerate nonself_mask and padding-validity from iota (no HBM mask read).
    row = jax.lax.broadcasted_iota(jnp.int32, x.shape, 0)
    lane = jax.lax.broadcasted_iota(jnp.int32, x.shape, 1)
    lin = (pl.program_id(0) * tile + row) * lanes + lane          # flat (T,R,D) index
    t_idx = _div_const(lin, rd)                                   # lin // (R*D)
    d_idx = _mod_const(lin, d_dim)                                # lin %  D
    nonself = (t_idx != d_idx).astype(jnp.float32)
    valid = (lin < n_valid).astype(jnp.float32)

    # BernoulliVariable.forward (eval path): selector = 1 where logit > 0.
    sig, sp = _sigmoid_softplus(x)
    det_sel_ref[...] = (x > 0.0).astype(jnp.float32) * nonself    # det_select * nonself_mask
    det_prob_ref[...] = sig

    split_prop_ref[...] = _stable_sigmoid(splits_ref[...])

    # Per-tile partial KL_det (padding masked out), placed at [0, 0] of an
    # (8, 128) slab so the parallel grid never carries a resident accumulator.
    kl = _kl_bernoulli_elem(x, sig, sp, log_p, log_1mp) * valid
    kl_tile = jnp.sum(kl)
    sub8 = jax.lax.broadcasted_iota(jnp.int32, (8, 128), 0)
    lane8 = jax.lax.broadcasted_iota(jnp.int32, (8, 128), 1)
    kl_ref[...] = jnp.where((sub8 == 0) & (lane8 == 0), kl_tile, 0.0)


def _rule_small_kernel(log_p, log_1mp,
                       # inputs
                       rule_q_ref, log_ab_ref,
                       # outputs
                       rule_sel_ref, rule_prob_ref, alpha_beta_ref, kl_ref):
    """Tiny gridless kernel for the per-rule / per-taxon parameters."""
    x = rule_q_ref[...]                                  # (T, R) f32
    sig, sp = _sigmoid_softplus(x)
    rule_sel_ref[...] = (x > 0.0).astype(jnp.int32)
    rule_prob_ref[...] = sig
    alpha_beta_ref[...] = jnp.exp(log_ab_ref[...])       # row 0: alpha_default, row 1: beta
    kl = _kl_bernoulli_elem(x, sig, sp, log_p, log_1mp)
    kl_ref[...] = jnp.broadcast_to(jnp.sum(kl), (1, 1))


# --------------------------------- wrapper -----------------------------------

class RuleDynamicsPallas:
    """JAX/Pallas re-implementation of RuleDynamics.forward (eval-mode selectors)."""

    def __init__(self, num_taxa, num_subj, num_rules, num_time,
                 rule_prior_prob, detector_prior_prob,
                 split_start_temp, split_end_temp, max_range,
                 concrete_start_temp=0.5, concrete_end_temp=0.001,
                 key=jax.random.PRNGKey(0)):
        self.num_taxa = num_taxa
        self.num_rules = num_rules
        self.num_covariates = num_taxa
        self.num_detectors = self.num_covariates
        self.num_time = num_time
        self.input_dim = (num_taxa * num_subj + 1) * num_time
        self.rule_prior_prob = float(rule_prior_prob)
        self.detector_prior_prob = float(detector_prior_prob)
        self.max_range = jnp.asarray(max_range, dtype=jnp.float32)          # (T,)
        # Annealed temperature: forward() only passes it through; use start_temp.
        self.split_temperature_value = float(split_start_temp)

        T, R, D = num_taxa, num_rules, self.num_detectors
        k = jax.random.split(key, 6)
        # Deterministic synthetic init (mirrors default_init() shapes/dists).
        self.det_q_params = jax.random.normal(k[0], (T, R, D), jnp.float32)          # N(0,1)
        self.rule_q_params = jax.random.normal(k[1], (T, R), jnp.float32)            # N(0,1)
        self.splits = -1.0 + 0.5 * jax.random.normal(k[2], (T, R, D), jnp.float32)   # N(-1,0.5)
        self.log_alpha_default = jax.random.normal(k[3], (T,), jnp.float32)
        self.log_beta = jax.random.normal(k[4], (T,), jnp.float32)
        self.alpha_rules = jax.random.normal(k[5], (T, R), jnp.float32)
        # Kept only for the pure-JAX reference; the kernel rebuilds it from iota.
        self.nonself_mask = (1.0 - jnp.eye(T, dtype=jnp.float32))

    def forward(self, inputs):
        _ = inputs['norm_data']  # read but unused by the reference forward()
        T, R, D = self.num_taxa, self.num_rules, self.num_detectors
        f32 = jnp.float32

        # Lane-dense flattening of the (T, R, D) streams with row tiling.
        n = T * R * D
        rows = -(-n // 128)
        tile = 512 if rows >= 512 else ((rows + 7) // 8) * 8   # multiple of 8 sublanes
        num_tiles = -(-rows // tile)
        rows_pad = num_tiles * tile

        def to_flat(x):
            flat = x.reshape(-1)
            pad = rows_pad * 128 - n
            if pad:
                # TODO(synk): at production sizes pick T*R*D a multiple of TILE*128 so
                # this host-side pad (and the matching slice below) disappears.
                flat = jnp.pad(flat, (0, pad))
            return flat.reshape(rows_pad, 128)

        det_q_flat = to_flat(self.det_q_params)
        splits_flat = to_flat(self.splits)
        log_ab = jnp.stack([self.log_alpha_default, self.log_beta], axis=0)   # (2, T)

        # ---- big streaming kernel: gridded, megacore-parallel over row tiles ----
        stream_kernel = functools.partial(
            _det_stream_kernel, R * D, D, n,
            math.log(self.detector_prior_prob), math.log1p(-self.detector_prior_prob))

        big_spec = pl.BlockSpec((tile, 128), lambda i: (i, 0))
        kl_spec = pl.BlockSpec((8, 128), lambda i: (i, 0))

        det_sel_f, det_prob_f, split_prop_f, kl_det_partials = pl.pallas_call(
            stream_kernel,
            out_shape=(
                jax.ShapeDtypeStruct((rows_pad, 128), f32),        # det_select * nonself_mask
                jax.ShapeDtypeStruct((rows_pad, 128), f32),        # det_prob
                jax.ShapeDtypeStruct((rows_pad, 128), f32),        # split_proportions
                jax.ShapeDtypeStruct((num_tiles * 8, 128), f32),   # per-tile KL_det partials
            ),
            grid_spec=pltpu.PrefetchScalarGridSpec(
                num_scalar_prefetch=0,
                grid=(num_tiles,),
                in_specs=[big_spec, big_spec],
                out_specs=(big_spec, big_spec, big_spec, kl_spec),
            ),
            compiler_params=pltpu.CompilerParams(
                dimension_semantics=("parallel",)),
        )(det_q_flat, splits_flat)

        # ---- tiny gridless kernel for rule-side params (runs once, no revisit) ----
        small_kernel = functools.partial(
            _rule_small_kernel,
            math.log(self.rule_prior_prob), math.log1p(-self.rule_prior_prob))
        vmem = pl.BlockSpec(memory_space=pltpu.MemorySpace.VMEM)
        # TODO(synk): pad (T, R) to a 128-lane multiple (and emit int8 selectors) once
        # production rule counts make these small outputs non-negligible.
        rule_sel, rule_prob, alpha_beta, kl_rule = pl.pallas_call(
            small_kernel,
            out_shape=(
                jax.ShapeDtypeStruct((T, R), jnp.int32),   # rule_select
                jax.ShapeDtypeStruct((T, R), f32),         # rule_prob
                jax.ShapeDtypeStruct((2, T), f32),         # [alpha_default; beta]
                jax.ShapeDtypeStruct((1, 1), f32),         # KL_rule
            ),
            in_specs=[vmem, vmem],
            out_specs=tuple([vmem] * 4),
        )(self.rule_q_params, log_ab)

        def from_flat(y):
            if rows_pad * 128 != n:
                y = y.reshape(-1)[:n]
            return y.reshape(T, R, D)

        KL_det = jnp.sum(kl_det_partials)   # partial slabs are zero except [0,0] per tile
        KL_rule = kl_rule[0, 0]
        params = {
            'rules': rule_sel,
            'detectors': from_flat(det_sel_f),
            'rule_prob': rule_prob,
            'det_prob': from_flat(det_prob_f),
            'max_range': self.max_range,
            'split_temperature': self.split_temperature_value,
            'alpha_rules': self.alpha_rules + 0.0,
            'alpha_default': alpha_beta[0],
            'beta': alpha_beta[1],
            'split_proportions': from_flat(split_prop_f),
            'KL_rule': KL_rule,
            'KL_det': KL_det,
        }
        KL = KL_det + KL_rule
        return params, KL


# ------------------------------ pure-JAX reference ----------------------------

def _reference_forward(model):
    """Independent pure-JAX reference of the same forward pass, for verification."""
    x_det = model.det_q_params
    x_rule = model.rule_q_params
    det_prob = jax.nn.sigmoid(x_det)
    rule_prob = jax.nn.sigmoid(x_rule)
    det_sel = (x_det > 0.0).astype(jnp.float32) * model.nonself_mask[:, None, :]
    rule_sel = (x_rule > 0.0).astype(jnp.int32)

    def kl_sum(q, p):
        return jnp.sum(q * (jnp.log(q) - math.log(p))
                       + (1.0 - q) * (jnp.log1p(-q) - math.log1p(-p)))

    kl_det = kl_sum(det_prob, model.detector_prior_prob)
    kl_rule = kl_sum(rule_prob, model.rule_prior_prob)
    return {
        'rules': rule_sel,
        'detectors': det_sel,
        'rule_prob': rule_prob,
        'det_prob': det_prob,
        'alpha_default': jnp.exp(model.log_alpha_default),
        'beta': jnp.exp(model.log_beta),
        'split_proportions': jax.nn.sigmoid(model.splits),
        'KL_det': kl_det,
        'KL_rule': kl_rule,
    }, kl_det + kl_rule


if __name__ == "__main__":
    num_taxa = 8
    num_subj = 2
    num_rules = 8
    num_time = 4

    key = jax.random.PRNGKey(0)
    k_data, k_range, k_model = jax.random.split(key, 3)

    max_range = 1.0 + jnp.abs(jax.random.normal(k_range, (num_taxa,), jnp.float32))
    model = RuleDynamicsPallas(
        num_taxa=num_taxa, num_subj=num_subj, num_rules=num_rules, num_time=num_time,
        rule_prior_prob=0.1, detector_prior_prob=0.1,
        split_start_temp=1.0, split_end_temp=0.01,
        max_range=max_range, key=k_model,
    )

    norm_data = jax.random.normal(k_data, (num_subj, num_taxa, num_time), jnp.float32)
    params, KL = model.forward({'norm_data': norm_data})
    jax.block_until_ready(KL)

    # correctness check against pure-JAX reference
    ref_params, ref_KL = _reference_forward(model)
    for name in ['rules', 'detectors', 'rule_prob', 'det_prob', 'alpha_default',
                 'beta', 'split_proportions', 'KL_det', 'KL_rule']:
        np.testing.assert_allclose(np.asarray(params[name]), np.asarray(ref_params[name]),
                                   rtol=1e-4, atol=1e-4)
    np.testing.assert_allclose(np.asarray(KL), np.asarray(ref_KL), rtol=1e-4, atol=1e-4)

    print("KERNEL_OK")
</pallas_src>

<mosaic_0001>
module attributes {stable_mosaic.version = 11 : i64} {
  func.func @_det_stream_kernel(%arg0: i32, %arg1: memref<8x128xf32, #tpu.memory_space<vmem>>, %arg2: memref<8x128xf32, #tpu.memory_space<vmem>>, %arg3: memref<8x128xf32, #tpu.memory_space<vmem>>, %arg4: memref<8x128xf32, #tpu.memory_space<vmem>>, %arg5: memref<8x128xf32, #tpu.memory_space<vmem>>, %arg6: memref<8x128xf32, #tpu.memory_space<vmem>>) attributes {dimension_semantics = [#tpu.dimension_semantics<parallel>], iteration_bounds = array<i64: 1>, scalar_prefetch = 0 : i64, scratch_operands = 0 : i64, tpu.core_type = #tpu.core_type<tc>, window_params = [{transform_indices = @transform_0, window_bounds = array<i64: 8, 128>}, {transform_indices = @transform_1, window_bounds = array<i64: 8, 128>}, {transform_indices = @transform_2, window_bounds = array<i64: 8, 128>}, {transform_indices = @transform_3, window_bounds = array<i64: 8, 128>}, {transform_indices = @transform_4, window_bounds = array<i64: 8, 128>}, {transform_indices = @transform_5, window_bounds = array<i64: 8, 128>}]} {
    %c0 = arith.constant 0 : index
    %c0_0 = arith.constant 0 : index
    %0 = vector.load %arg1[%c0, %c0_0] : memref<8x128xf32, #tpu.memory_space<vmem>>, vector<8x128xf32>
    %1 = tpu.iota {dimensions = array<i32: 0>} : vector<8x128xi32>
    %2 = tpu.iota {dimensions = array<i32: 1>} : vector<8x128xi32>
    %c8_i32 = arith.constant 8 : i32
    %3 = arith.muli %arg0, %c8_i32 : i32
    %4 = vector.broadcast %3 : i32 to vector<8x128xi32>
    %5 = arith.addi %4, %1 : vector<8x128xi32>
    %c128_i32 = arith.constant 128 : i32
    %6 = vector.broadcast %c128_i32 : i32 to vector<8x128xi32>
    %7 = arith.muli %5, %6 : vector<8x128xi32>
    %8 = arith.addi %7, %2 : vector<8x128xi32>
    %c6_i32 = arith.constant 6 : i32
    %9 = vector.broadcast %c6_i32 : i32 to vector<8x128xi32>
    %10 = arith.shrsi %8, %9 : vector<8x128xi32>
    %c7_i32 = arith.constant 7 : i32
    %11 = vector.broadcast %c7_i32 : i32 to vector<8x128xi32>
    %12 = arith.andi %8, %11 : vector<8x128xi32>
    %13 = arith.cmpi ne, %10, %12 : vector<8x128xi32>
    %14 = arith.extui %13 : vector<8x128xi1> to vector<8x128xi32>
    %15 = arith.sitofp %14 : vector<8x128xi32> to vector<8x128xf32>
    %c512_i32 = arith.constant 512 : i32
    %16 = vector.broadcast %c512_i32 : i32 to vector<8x128xi32>
    %17 = arith.cmpi slt, %8, %16 : vector<8x128xi32>
    %18 = arith.extui %17 : vector<8x128xi1> to vector<8x128xi32>
    %19 = arith.sitofp %18 : vector<8x128xi32> to vector<8x128xf32>
    %20 = math.absf %0 : vector<8x128xf32>
    %cst = arith.constant 0.000000e+00 : f32
    %21 = vector.broadcast %cst : f32 to vector<8x128xf32>
    %22 = arith.subf %21, %20 : vector<8x128xf32>
    %23 = math.exp %22 : vector<8x128xf32>
    %cst_1 = arith.constant 1.000000e+00 : f32
    %24 = vector.broadcast %cst_1 : f32 to vector<8x128xf32>
    %25 = arith.addf %24, %23 : vector<8x128xf32>
    %cst_2 = arith.constant 1.000000e+00 : f32
    %26 = vector.broadcast %cst_2 : f32 to vector<8x128xf32>
    %27 = arith.divf %26, %25 : vector<8x128xf32>
    %cst_3 = arith.constant 0.000000e+00 : f32
    %28 = vector.broadcast %cst_3 : f32 to vector<8x128xf32>
    %29 = arith.cmpf oge, %0, %28 : vector<8x128xf32>
    %30 = arith.mulf %23, %27 : vector<8x128xf32>
    %31 = arith.select %29, %27, %30 : vector<8x128xi1>, vector<8x128xf32>
    %cst_4 = arith.constant 0.000000e+00 : f32
    %32 = vector.broadcast %cst_4 : f32 to vector<8x128xf32>
    %33 = arith.maximumf %0, %32 : vector<8x128xf32>
    %cst_5 = arith.constant 1.000000e+00 : f32
    %34 = vector.broadcast %cst_5 : f32 to vector<8x128xf32>
    %35 = arith.addf %34, %23 : vector<8x128xf32>
    %36 = math.log %35 : vector<8x128xf32>
    %37 = arith.addf %33, %36 : vector<8x128xf32>
    %cst_6 = arith.constant 0.000000e+00 : f32
    %38 = vector.broadcast %cst_6 : f32 to vector<8x128xf32>
    %39 = arith.cmpf ogt, %0, %38 : vector<8x128xf32>
    %40 = arith.extui %39 : vector<8x128xi1> to vector<8x128xi32>
    %41 = arith.sitofp %40 : vector<8x128xi32> to vector<8x128xf32>
    %42 = arith.mulf %41, %15 : vector<8x128xf32>
    %c0_7 = arith.constant 0 : index
    %c0_8 = arith.constant 0 : index
    %43 = vector.load %arg3[%c0_7, %c0_8] : memref<8x128xf32, #tpu.memory_space<vmem>>, vector<8x128xf32>
    tpu.vector_store %arg3[%c0_7, %c0_8], %42 {strides = array<i32>} : memref<8x128xf32, #tpu.memory_space<vmem>>, vector<8x128xf32>,
    %c0_9 = arith.constant 0 : index
    %c0_10 = arith.constant 0 : index
    %44 = vector.load %arg4[%c0_9, %c0_10] : memref<8x128xf32, #tpu.memory_space<vmem>>, vector<8x128xf32>
    tpu.vector_store %arg4[%c0_9, %c0_10], %31 {strides = array<i32>} : memref<8x128xf32, #tpu.memory_space<vmem>>, vector<8x128xf32>,
    %c0_11 = arith.constant 0 : index
    %c0_12 = arith.constant 0 : index
    %45 = vector.load %arg2[%c0_11, %c0_12] : memref<8x128xf32, #tpu.memory_space<vmem>>, vector<8x128xf32>
    %46 = math.absf %45 : vector<8x128xf32>
    %cst_13 = arith.constant 0.000000e+00 : f32
    %47 = vector.broadcast %cst_13 : f32 to vector<8x128xf32>
    %48 = arith.subf %47, %46 : vector<8x128xf32>
    %49 = math.exp %48 : vector<8x128xf32>
    %cst_14 = arith.constant 1.000000e+00 : f32
    %50 = vector.broadcast %cst_14 : f32 to vector<8x128xf32>
    %51 = arith.addf %50, %49 : vector<8x128xf32>
    %cst_15 = arith.constant 1.000000e+00 : f32
    %52 = vector.broadcast %cst_15 : f32 to vector<8x128xf32>
    %53 = arith.divf %52, %51 : vector<8x128xf32>
    %cst_16 = arith.constant 0.000000e+00 : f32
    %54 = vector.broadcast %cst_16 : f32 to vector<8x128xf32>
    %55 = arith.cmpf oge, %45, %54 : vector<8x128xf32>
    %56 = arith.mulf %49, %53 : vector<8x128xf32>
    %57 = arith.select %55, %53, %56 : vector<8x128xi1>, vector<8x128xf32>
    %c0_17 = arith.constant 0 : index
    %c0_18 = arith.constant 0 : index
    %58 = vector.load %arg5[%c0_17, %c0_18] : memref<8x128xf32, #tpu.memory_space<vmem>>, vector<8x128xf32>
    tpu.vector_store %arg5[%c0_17, %c0_18], %57 {strides = array<i32>} : memref<8x128xf32, #tpu.memory_space<vmem>>, vector<8x128xf32>,
    %59 = arith.subf %0, %37 : vector<8x128xf32>
    %cst_19 = arith.constant 0.000000e+00 : f32
    %60 = vector.broadcast %cst_19 : f32 to vector<8x128xf32>
    %61 = arith.subf %60, %37 : vector<8x128xf32>
    %cst_20 = arith.constant -2.30258512 : f32
    %62 = vector.broadcast %cst_20 : f32 to vector<8x128xf32>
    %63 = arith.subf %59, %62 : vector<8x128xf32>
    %64 = arith.mulf %31, %63 : vector<8x128xf32>
    %cst_21 = arith.constant 1.000000e+00 : f32
    %65 = vector.broadcast %cst_21 : f32 to vector<8x128xf32>
    %66 = arith.subf %65, %31 : vector<8x128xf32>
    %cst_22 = arith.constant -0.105360515 : f32
    %67 = vector.broadcast %cst_22 : f32 to vector<8x128xf32>
    %68 = arith.subf %61, %67 : vector<8x128xf32>
    %69 = arith.mulf %66, %68 : vector<8x128xf32>
    %70 = arith.addf %64, %69 : vector<8x128xf32>
    %71 = arith.mulf %70, %19 : vector<8x128xf32>
    %72 = vector.shape_cast %71 : vector<8x128xf32> to vector<1x8x128xf32>
    %cst_23 = arith.constant dense<0.000000e+00> : vector<1xf32>
    %73 = vector.multi_reduction <add>, %72, %cst_23 [1, 2] : vector<1x8x128xf32> to vector<1xf32>
    %74 = vector.shape_cast %73 : vector<1xf32> to vector<1x1x1xf32>
    %75 = vector.extract %74[0, 0, 0] : f32 from vector<1x1x1xf32>
    %76 = tpu.iota {dimensions = array<i32: 0>} : vector<8x128xi32>
    %77 = tpu.iota {dimensions = array<i32: 1>} : vector<8x128xi32>
    %c0_i32 = arith.constant 0 : i32
    %78 = vector.broadcast %c0_i32 : i32 to vector<8x128xi32>
    %79 = arith.cmpi eq, %76, %78 : vector<8x128xi32>
    %c0_i32_24 = arith.constant 0 : i32
    %80 = vector.broadcast %c0_i32_24 : i32 to vector<8x128xi32>
    %81 = arith.cmpi eq, %77, %80 : vector<8x128xi32>
    %82 = arith.andi %79, %81 : vector<8x128xi1>
    %cst_25 = arith.constant 0.000000e+00 : f32
    %83 = vector.broadcast %75 : f32 to vector<8x128xf32>
    %84 = vector.broadcast %cst_25 : f32 to vector<8x128xf32>
    %85 = arith.select %82, %83, %84 : vector<8x128xi1>, vector<8x128xf32>
    %c0_26 = arith.constant 0 : index
    %c0_27 = arith.constant 0 : index
    %86 = vector.load %arg6[%c0_26, %c0_27] : memref<8x128xf32, #tpu.memory_space<vmem>>, vector<8x128xf32>
    tpu.vector_store %arg6[%c0_26, %c0_27], %85 {strides = array<i32>} : memref<8x128xf32, #tpu.memory_space<vmem>>, vector<8x128xf32>,
    return
  }
  func.func @transform_0(%arg0: i32) -> (i32, i32) {
    %c0_i32 = arith.constant 0 : i32
    %c0_i32_0 = arith.constant 0 : i32
    return %arg0, %c0_i32 : i32, i32
  }
  func.func @transform_1(%arg0: i32) -> (i32, i32) {
    %c0_i32 = arith.constant 0 : i32
    %c0_i32_0 = arith.constant 0 : i32
    return %arg0, %c0_i32 : i32, i32
  }
  func.func @transform_2(%arg0: i32) -> (i32, i32) {
    %c0_i32 = arith.constant 0 : i32
    %c0_i32_0 = arith.constant 0 : i32
    return %arg0, %c0_i32 : i32, i32
  }
  func.func @transform_3(%arg0: i32) -> (i32, i32) {
    %c0_i32 = arith.constant 0 : i32
    %c0_i32_0 = arith.constant 0 : i32
    return %arg0, %c0_i32 : i32, i32
  }
  func.func @transform_4(%arg0: i32) -> (i32, i32) {
    %c0_i32 = arith.constant 0 : i32
    %c0_i32_0 = arith.constant 0 : i32
    return %arg0, %c0_i32 : i32, i32
  }
  func.func @transform_5(%arg0: i32) -> (i32, i32) {
    %c0_i32 = arith.constant 0 : i32
    %c0_i32_0 = arith.constant 0 : i32
    return %arg0, %c0_i32 : i32, i32
  }
}

</mosaic_0001>

<llo_original>
// kernel: tpu_custom_call.1
$region0: #{tpu_custom_call.1}
  #allocation0 [shape = 'u32[]', space=smem, size = 0x4, offset = 0x4, fixed_abs, tag = 'smem constant byte address 0x4 - core index']
  #allocation1 [shape = 'u32[144,128]{1,0:T(1,128)}', space=vmem, size = 0x12000, scoped, tag = 'internal scratch']
  %s0 = inlined_call_operand.hbm [shape: f32[8,128], index: 0, kind: input, shape index: {}]
  %s1 = inlined_call_operand.hbm [shape: f32[8,128], index: 1, kind: input, shape index: {}]
  %s2 = inlined_call_operand.hbm [shape: f32[8,128], index: 2, kind: output, shape index: {0}]
  %s3 = inlined_call_operand.hbm [shape: f32[8,128], index: 3, kind: output, shape index: {1}]
  %s4 = inlined_call_operand.hbm [shape: f32[8,128], index: 4, kind: output, shape index: {2}]
  %s5 = inlined_call_operand.hbm [shape: f32[8,128], index: 5, kind: output, shape index: {3}]
  %6 = xla_tuple %s2, %s3, %s4, %s5
  %s7 = sld [smem:[#allocation0]]
  $region50: #{tpu_custom_call.1} parent=0
    _
  %s9 = ssub.s32 1, %s7
  %s10 = scalar_select 0, %s9, %s7
  $region1: #{tpu_custom_call.1} parent=0
    #allocation2 [shape = 'u8[4096]{0}', space=vmem, size = 0x1000, scoped, tag = 'input window, operand 0, single buffered']
    #allocation3 [shape = 's32[1]{0}', space=sflag, size = 0x4, scoped, tag = 'scoped memory for tpu_custom_call.1']
    #allocation4 [shape = 's32[1]{0}', space=sflag, size = 0x4, scoped, tag = 'scoped memory for tpu_custom_call.1']
    #allocation5 [shape = 'u8[4096]{0}', space=vmem, size = 0x1000, scoped, tag = 'input window, operand 1, single buffered']
    #allocation6 [shape = 's32[1]{0}', space=sflag, size = 0x4, scoped, tag = 'scoped memory for tpu_custom_call.1']
    #allocation7 [shape = 'u8[4096]{0}', space=vmem, size = 0x1000, scoped, tag = 'output window, operand 0, single buffered']
    #allocation8 [shape = 'u8[4096]{0}', space=vmem, size = 0x1000, scoped, tag = 'output window, operand 1, single buffered']
    #allocation9 [shape = 's32[1]{0}', space=sflag, size = 0x4, scoped, tag = 'scoped memory for tpu_custom_call.1']
    #allocation10 [shape = 'u8[4096]{0}', space=vmem, size = 0x1000, scoped, tag = 'output window, operand 2, single buffered']
    #allocation11 [shape = 'u8[4096]{0}', space=vmem, size = 0x1000, scoped, tag = 'output window, operand 3, single buffered']
    #allocation12 [shape = 's32[1]{0}', space=sflag, size = 0x4, scoped, tag = 'scoped memory for tpu_custom_call.1']
    %11 = vsyncpa [#allocation3], 0
    %12 = vsyncpa [#allocation6], 0
    %13 = vsyncpa [#allocation4], 0
    %14 = vsyncpa [#allocation9], 0
    %15 = vsyncpa [#allocation12], 0
    // Predicated region
    $region2: #{tpu_custom_call.1} parent=1 // pred_check
      _
    $region3: #{tpu_custom_call.1} parent=1 // pred_check_branch
      %17 = sbr.rel (0) target = $region5
    $region4: #{tpu_custom_call.1} parent=1 // pred_region
      %s19 = ssub.s32 128, 128
      %20 = vsyncadd [#allocation3], %s19
      %s22 = sshll.u32 [#allocation2], 4
      %s23 = int_to_ptr.vmem [resolvable:$true] %s22
      %25 = dma.hbm_to_vmem [thread:$0]  %s0, 128, %s23, [#allocation3]
    $region5: #{tpu_custom_call.1} parent=1 // pred_fallthru
      _
    // Predicated region
    $region6: #{tpu_custom_call.1} parent=1 // pred_check
      _
    $region7: #{tpu_custom_call.1} parent=1 // pred_check_branch
      %27 = sbr.rel (0) target = $region9
    $region8: #{tpu_custom_call.1} parent=1 // pred_region
      %s29 = ssub.s32 128, 128
      %30 = vsyncadd [#allocation6], %s29
      %s32 = sshll.u32 [#allocation5], 4
      %s33 = int_to_ptr.vmem [resolvable:$true] %s32
      %35 = dma.hbm_to_vmem [thread:$0]  %s1, 128, %s33, [#allocation6]
    $region9: #{tpu_custom_call.1} parent=1 // pred_fallthru
      _
    // Predicated region
    $region10: #{tpu_custom_call.1} parent=1 // pred_check
      _
    $region11: #{tpu_custom_call.1} parent=1 // pred_check_branch
      %37 = sbr.rel (0) target = $region13
    $region12: #{tpu_custom_call.1} parent=1 // pred_region
      %38 = dma.done [#allocation3], 128
    $region13: #{tpu_custom_call.1} parent=1 // pred_fallthru
      _
    // Predicated region
    $region14: #{tpu_custom_call.1} parent=1 // pred_check
      _
    $region15: #{tpu_custom_call.1} parent=1 // pred_check_branch
      %40 = sbr.rel (0) target = $region17
    $region16: #{tpu_custom_call.1} parent=1 // pred_region
      %41 = dma.done [#allocation6], 128
    $region17: #{tpu_custom_call.1} parent=1 // pred_fallthru
      _
    %v42 = vld [vmem:[#allocation2] sm:$0xff]
    %v43 = vlaneseq
    %v44 = vshrl.u32 %v43, 7
    %v45 = vlaneseq
    %v46 = vand.u32 %v45, 127
    %s47 = smul.u32 0, 8
    %v48 = vstv %s47
    %v49 = vadd.s32 %v48, %v44
    %v50 = vmul.u32 %v49, 128
    %v51 = vadd.s32 %v50, %v46
    %v52 = vshra.s32 %v51, 6
    %v53 = vand.u32 %v51, 7
    %vm54 = vcmp.ne.s32.totalorder %v52, %v53
    %v55 = vsel %vm54, 1, 0
    %v56 = vcvt.s32.f32 %v55
    %vm57 = vcmp.lt.s32.totalorder %v51, 512
    %v58 = vsel %vm57, 1, 0
    %v59 = vcvt.s32.f32 %v58
    %v60 = vand.u32 2147483647, %v42
    %v61 = vsub.f32 0.0, %v60
    %v62 = vmul.f32 %v61, 1.442695
    %v63 = vpow.pop %v62
    %v64 = vadd.f32 %v63, 1.0
    %v65 = vrcp.pop %v64
    %v66 = vmul.f32 1.0, %v65
    %vm67 = vcmp.ge.f32.partialorder %v42, 0.0
    %v68 = vmul.f32 %v63, %v66
    %v69 = vsel %vm67, %v66, %v68
    %v70 = vmax.f32 %v42, 0.0
    %v71 = vlog2.pop %v64
    %v72 = vmul.f32 %v71, 0.6931472
    %v73 = vadd.f32 %v70, %v72
    %vm74 = vcmp.gt.f32.partialorder %v42, 0.0
    %v75 = vsel %vm74, 1, 0
    %v76 = vcvt.s32.f32 %v75
    %v77 = vmul.f32 %v76, %v56
    %78 = vst [vmem:[#allocation7] sm:$0xff] %v77
    %79 = vst [vmem:[#allocation8] sm:$0xff] %v69
    %v80 = vld [vmem:[#allocation5] sm:$0xff]
    %v81 = vand.u32 2147483647, %v80
    %v82 = vsub.f32 0.0, %v81
    %v83 = vmul.f32 %v82, 1.442695
    %v84 = vpow.pop %v83
    %v85 = vadd.f32 %v84, 1.0
    %v86 = vrcp.pop %v85
    %v87 = vmul.f32 1.0, %v86
    %vm88 = vcmp.ge.f32.partialorder %v80, 0.0
    %v89 = vmul.f32 %v84, %v87
    %v90 = vsel %vm88, %v87, %v89
    %91 = vst [vmem:[#allocation10] sm:$0xff] %v90
    %v92 = vsub.f32 %v42, %v73
    %v93 = vsub.f32 0.0, %v73
    %v94 = vsub.f32 %v92, -2.3025851
    %v95 = vmul.f32 %v69, %v94
    %v96 = vsub.f32 1.0, %v69
    %v97 = vsub.f32 %v93, -0.105360515
    %v98 = vmul.f32 %v96, %v97
    %v99 = vadd.f32 %v95, %v98
    %v100 = vmul.f32 %v99, %v59
    %101 = vadd.xlane.f32.xlu0 %v100
    %v102 = vpop.xlane.xlu0 %101
    %v103 = vrot.slane %v102, 4
    %v104 = vadd.f32 %v102, %v103
    %v105 = vrot.slane %v104, 2
    %v106 = vadd.f32 %v104, %v105
    %v107 = vrot.slane %v106, 1
    %v108 = vadd.f32 %v106, %v107
    %s109 = vtos %v108
    %vm110 = vcmp.eq.s32.totalorder %v44, 0
    %vm111 = vcmp.eq.s32.totalorder %v46, 0
    %vm112 = vmand %vm110, %vm111
    %v113 = vstv %s109
    %v114 = vsel %vm112, %v113, 0.0
    %115 = vst [vmem:[#allocation11] sm:$0xff] %v114
    // Predicated region
    $region18: #{tpu_custom_call.1} parent=1 // pred_check
      _
    $region19: #{tpu_custom_call.1} parent=1 // pred_check_branch
      %117 = sbr.rel (0) target = $region21
    $region20: #{tpu_custom_call.1} parent=1 // pred_region
      %s119 = ssub.s32 128, 128
      %120 = vsyncadd [#allocation4], %s119
      %s122 = sshll.u32 [#allocation7], 4
      %s123 = int_to_ptr.vmem [resolvable:$true] %s122
      %125 = dma.vmem_to_hbm [thread:$0]  %s123, 128, %s2, [#allocation4]
    $region21: #{tpu_custom_call.1} parent=1 // pred_fallthru
      _
    // Predicated region
    $region22: #{tpu_custom_call.1} parent=1 // pred_check
      _
    $region23: #{tpu_custom_call.1} parent=1 // pred_check_branch
      %127 = sbr.rel (0) target = $region25
    $region24: #{tpu_custom_call.1} parent=1 // pred_region
      %s129 = ssub.s32 128, 128
      %130 = vsyncadd [#allocation9], %s129
      %s132 = sshll.u32 [#allocation8], 4
      %s133 = int_to_ptr.vmem [resolvable:$true] %s132
      %135 = dma.vmem_to_hbm [thread:$0]  %s133, 128, %s3, [#allocation9]
    $region25: #{tpu_custom_call.1} parent=1 // pred_fallthru
      _
    // Predicated region
    $region26: #{tpu_custom_call.1} parent=1 // pred_check
      _
    $region27: #{tpu_custom_call.1} parent=1 // pred_check_branch
      %137 = sbr.rel (0) target = $region29
    $region28: #{tpu_custom_call.1} parent=1 // pred_region
      %s139 = ssub.s32 128, 128
      %140 = vsyncadd [#allocation9], %s139
      %s142 = sshll.u32 [#allocation10], 4
      %s143 = int_to_ptr.vmem [resolvable:$true] %s142
      %145 = dma.vmem_to_hbm [thread:$0]  %s143, 128, %s4, [#allocation9]
    $region29: #{tpu_custom_call.1} parent=1 // pred_fallthru
      _
    // Predicated region
    $region30: #{tpu_custom_call.1} parent=1 // pred_check
      _
    $region31: #{tpu_custom_call.1} parent=1 // pred_check_branch
      %147 = sbr.rel (0) target = $region33
    $region32: #{tpu_custom_call.1} parent=1 // pred_region
      %s149 = ssub.s32 128, 128
      %150 = vsyncadd [#allocation12], %s149
      %s152 = sshll.u32 [#allocation11], 4
      %s153 = int_to_ptr.vmem [resolvable:$true] %s152
      %155 = dma.vmem_to_hbm [thread:$0]  %s153, 128, %s5, [#allocation12]
    $region33: #{tpu_custom_call.1} parent=1 // pred_fallthru
      _
    // Predicated region
    $region34: #{tpu_custom_call.1} parent=1 // pred_check
      _
    $region35: #{tpu_custom_call.1} parent=1 // pred_check_branch
      %157 = sbr.rel (0) target = $region37
    $region36: #{tpu_custom_call.1} parent=1 // pred_region
      %158 = dma.done [#allocation4], 128
    $region37: #{tpu_custom_call.1} parent=1 // pred_fallthru
      _
    // Predicated region
    $region38: #{tpu_custom_call.1} parent=1 // pred_check
      _
    $region39: #{tpu_custom_call.1} parent=1 // pred_check_branch
      %160 = sbr.rel (0) target = $region41
    $region40: #{tpu_custom_call.1} parent=1 // pred_region
      %161 = dma.done [#allocation9], 128
    $region41: #{tpu_custom_call.1} parent=1 // pred_fallthru
      _
    // Predicated region
    $region42: #{tpu_custom_call.1} parent=1 // pred_check
      _
    $region43: #{tpu_custom_call.1} parent=1 // pred_check_branch
      %163 = sbr.rel (0) target = $region45
    $region44: #{tpu_custom_call.1} parent=1 // pred_region
      %164 = dma.done [#allocation9], 128
    $region45: #{tpu_custom_call.1} parent=1 // pred_fallthru
      _
    // Predicated region
    $region46: #{tpu_custom_call.1} parent=1 // pred_check
      _
    $region47: #{tpu_custom_call.1} parent=1 // pred_check_branch
      %166 = sbr.rel (0) target = $region49
    $region48: #{tpu_custom_call.1} parent=1 // pred_region
      %167 = dma.done [#allocation12], 128
    $region49: #{tpu_custom_call.1} parent=1 // pred_fallthru
      _
    %168 = vsyncpa [#allocation3], 1
    %169 = vsyncpa [#allocation6], 1
    %170 = vsyncpa [#allocation4], 1
    %171 = vsyncpa [#allocation9], 1
    %172 = vsyncpa [#allocation12], 1

</llo_original>
